<compile_context>
chip_gen: v7x
topology: tpu7x:2x2x1
jax: 0.10.0
libtpu: 0.0.40
codegen_flags: <defaults>
</compile_context>

<pallas_src>
import functools

import jax
import jax.numpy as jnp
from jax import lax
from jax.experimental import pallas as pl
from jax.experimental.pallas import tpu as pltpu


# ----------------------------------------------------------------------------
# Kernel
# ----------------------------------------------------------------------------
def _attention_kernel(xq_ref, xkv_ref, w_ref, b_ref, out_ref, attn_ref,
                      kT_sc, v_sc, *, compute_dtype):
    # xq_ref:   (TB, tq, D)   query rows of this q tile
    # xkv_ref:  (TB, S,  D)   full sequence (re-DMA'd only when the batch
    #                          block changes: index_map ignores the q axis)
    # w_ref:    (3, D, D)     stacked [Wq*scale | Wk | Wv] (pre-transposed)
    # b_ref:    (3, 1, D)     stacked [bq*scale | bk | bv]
    # out_ref:  (TB, tq, D)
    # attn_ref: (TB, tq, S)
    # kT_sc:    (TB, D, S)    persistent K^T cache (f32)
    # v_sc:     (TB, S, D)    persistent V cache   (f32)
    qi = pl.program_id(1)

    # K / V projections once per batch block, reused across all q tiles.
    @pl.when(qi == 0)
    def _compute_kv():
        xkv = xkv_ref[...].astype(compute_dtype)                       # (TB,S,D)
        k = lax.dot_general(xkv, w_ref[1].astype(compute_dtype),
                            dimension_numbers=(((2,), (0,)), ((), ())),
                            preferred_element_type=jnp.float32) + b_ref[1]
        v = lax.dot_general(xkv, w_ref[2].astype(compute_dtype),
                            dimension_numbers=(((2,), (0,)), ((), ())),
                            preferred_element_type=jnp.float32) + b_ref[2]
        # Explicit one-time transpose -> scores matmul below is MXU-native
        # (no hidden per-q-step relayout of K).
        kT_sc[...] = jnp.swapaxes(k, 1, 2)                              # (TB,D,S)
        v_sc[...] = v                                                   # (TB,S,D)

    # Q projection for this q tile (scale already folded into W/b).
    xq = xq_ref[...].astype(compute_dtype)                              # (TB,tq,D)
    q = lax.dot_general(xq, w_ref[0].astype(compute_dtype),
                        dimension_numbers=(((2,), (0,)), ((), ())),
                        preferred_element_type=jnp.float32) + b_ref[0]  # (TB,tq,D)

    # scores[b,i,j] = sum_d q[b,i,d] * kT[b,d,j]  (already scaled)
    scores = lax.dot_general(q.astype(compute_dtype),
                             kT_sc[...].astype(compute_dtype),
                             dimension_numbers=(((2,), (1,)), ((0,), (0,))),
                             preferred_element_type=jnp.float32)        # (TB,tq,S)

    # Numerically-stable softmax over keys, all elementwise math in f32.
    m = jnp.max(scores, axis=-1, keepdims=True)
    e = jnp.exp(scores - m)
    denom = jnp.sum(e, axis=-1, keepdims=True)
    r = pl.reciprocal(denom, approx=True)           # EUP estimate (free slot)
    r = r * (jnp.float32(2.0) - denom * r)          # one Newton step -> ~exact f32
    w = e * r                                                            # (TB,tq,S)

    # out[b,i,d] = sum_j w[b,i,j] * v[b,j,d]
    out = lax.dot_general(w.astype(compute_dtype),
                          v_sc[...].astype(compute_dtype),
                          dimension_numbers=(((2,), (1,)), ((0,), (0,))),
                          preferred_element_type=jnp.float32)            # (TB,tq,D)

    out_ref[...] = out.astype(out_ref.dtype)
    attn_ref[...] = w.astype(attn_ref.dtype)


# ----------------------------------------------------------------------------
# Tiling / VMEM sizing
# ----------------------------------------------------------------------------
def _pad(n, m):
    return ((n + m - 1) // m) * m


def _block_bytes(shape, bytes_per_elem=4):
    """f32 VMEM footprint of a block including (8,128) layout padding."""
    if len(shape) == 1:
        return _pad(shape[0] * bytes_per_elem, 512)
    *lead, s, l = shape
    n = 1
    for d in lead:
        n *= d
    return n * _pad(s, 8) * _pad(l, 128) * bytes_per_elem


def _vmem_estimate(tb, tq, S, D):
    """Approximate resident VMEM bytes for one grid step (double-buffered IO +
    persistent scratch + live f32 temporaries)."""
    io = 2 * (_block_bytes((tb, tq, D))      # xq
              + _block_bytes((tb, S, D))     # xkv
              + _block_bytes((3, D, D))      # weights
              + _block_bytes((3, 1, D))      # biases
              + _block_bytes((tb, tq, D))    # out
              + _block_bytes((tb, tq, S)))   # attn
    scratch = _block_bytes((tb, D, S)) + _block_bytes((tb, S, D))
    temps = 3 * _block_bytes((tb, tq, S)) + 3 * _block_bytes((tb, tq, D))
    return io + scratch + temps


def _pick_tiles(B, S, D, vmem_budget_bytes=40 * 1024 * 1024):
    """Pick (TB, tq) from a VMEM budget. Prefers >= 2 batch grid steps when
    B >= 2 so the 'parallel' axis shards across TensorCores and the pipeline
    can prefetch the next block."""
    def divisors(n):
        return [d for d in range(1, n + 1) if n % d == 0]

    # q-tile must equal S or be a multiple of 8 (BlockSpec sublane rule).
    tq_cands = sorted({S} | {d for d in divisors(S) if d % 8 == 0}, reverse=True)

    tb_cands = sorted(divisors(B), reverse=True)
    preferred = [tb for tb in tb_cands if B // tb >= 2] or tb_cands

    for tb in preferred:
        for tq in tq_cands:
            if _vmem_estimate(tb, tq, S, D) <= vmem_budget_bytes:
                return tb, tq
    # TODO(synk): if even (1, min_tq, S) blows the budget, a flash-style
    # kv-tiled online softmax is required; fall back to the smallest tile.
    return 1, min(tq_cands)


# ----------------------------------------------------------------------------
# Wrappers
# ----------------------------------------------------------------------------
def prepare_attention_params(wq, bq, wk, bk, wv, bv):
    """One-time parameter preparation (hoisted out of the per-call path):
    transpose torch-style (out,in) weights, fold the 1/sqrt(D) attention scale
    into the query projection, and stack Q/K/V into single tensors."""
    D = wq.shape[0]
    scale = 1.0 / jnp.sqrt(jnp.float32(D))
    w_stack = jnp.stack([wq.T * scale, wk.T, wv.T], axis=0).astype(jnp.float32)
    b_stack = jnp.stack([bq * scale, bk, bv], axis=0).reshape(3, 1, D)
    b_stack = b_stack.astype(jnp.float32)
    return w_stack, b_stack


def attention_block_prepared(x, w_stack, b_stack, *, compute_dtype=jnp.float32):
    """x: (B, S, D); w_stack: (3, D, D); b_stack: (3, 1, D).
    Returns (output, attention_weights): (B, S, D), (B, S, S)."""
    B, S, D = x.shape
    TB, tq = _pick_tiles(B, S, D)
    nb, nq = B // TB, S // tq

    vmem_limit = int(min(56 * 1024 * 1024,
                         max(16 * 1024 * 1024, 2 * _vmem_estimate(TB, tq, S, D))))

    kernel = functools.partial(_attention_kernel, compute_dtype=compute_dtype)

    grid_spec = pltpu.PrefetchScalarGridSpec(
        num_scalar_prefetch=0,
        grid=(nb, nq),
        in_specs=[
            # query rows of this q tile
            pl.BlockSpec((TB, tq, D), lambda b, q: (b, q, 0)),
            # full sequence for K/V; same block across q -> DMA'd once per b
            pl.BlockSpec((TB, S, D), lambda b, q: (b, 0, 0)),
            pl.BlockSpec((3, D, D), lambda b, q: (0, 0, 0)),
            pl.BlockSpec((3, 1, D), lambda b, q: (0, 0, 0)),
        ],
        out_specs=[
            pl.BlockSpec((TB, tq, D), lambda b, q: (b, q, 0)),
            pl.BlockSpec((TB, tq, S), lambda b, q: (b, q, 0)),
        ],
        scratch_shapes=[
            pltpu.VMEM((TB, D, S), jnp.float32),   # K^T cache
            pltpu.VMEM((TB, S, D), jnp.float32),   # V cache
        ],
    )

    out_shapes = (
        jax.ShapeDtypeStruct((B, S, D), x.dtype),
        jax.ShapeDtypeStruct((B, S, S), x.dtype),
    )

    return pl.pallas_call(
        kernel,
        out_shape=out_shapes,
        grid_spec=grid_spec,
        compiler_params=pltpu.CompilerParams(
            # batch axis parallel (megacore); q axis arbitrary (sequential) so
            # the per-batch K/V cache init at qi==0 is always seen first.
            dimension_semantics=("parallel", "arbitrary"),
            vmem_limit_bytes=vmem_limit),
    )(x, x, w_stack, b_stack)


def attention_block(x, wq, bq, wk, bk, wv, bv, *, compute_dtype=jnp.float32):
    """Convenience wrapper matching the original signature (prep included)."""
    w_stack, b_stack = prepare_attention_params(wq, bq, wk, bk, wv, bv)
    return attention_block_prepared(x, w_stack, b_stack,
                                    compute_dtype=compute_dtype)


# ----------------------------------------------------------------------------
# Pure-JAX reference (mirrors the PyTorch forward exactly)
# ----------------------------------------------------------------------------
def _reference(x, wq, bq, wk, bk, wv, bv):
    D = x.shape[-1]
    Q = x @ wq.T + bq
    K = x @ wk.T + bk
    V = x @ wv.T + bv
    att = (Q @ jnp.swapaxes(K, 1, 2)) / jnp.sqrt(jnp.float32(D))
    w = jax.nn.softmax(att, axis=-1)
    return w @ V, w


if __name__ == "__main__":
    B, S, D = 2, 8, 32  # batch=2, seq=8, input_dim=32

    key = jax.random.PRNGKey(0)
    kx, kwq, kbq, kwk, kbk, kwv, kbv = jax.random.split(key, 7)

    x = jax.random.normal(kx, (B, S, D), dtype=jnp.float32)
    # torch-style Linear params: W (out, in), b (out,)
    bound = 1.0 / (D ** 0.5)
    wq = jax.random.uniform(kwq, (D, D), jnp.float32, -bound, bound)
    bq = jax.random.uniform(kbq, (D,), jnp.float32, -bound, bound)
    wk = jax.random.uniform(kwk, (D, D), jnp.float32, -bound, bound)
    bk = jax.random.uniform(kbk, (D,), jnp.float32, -bound, bound)
    wv = jax.random.uniform(kwv, (D, D), jnp.float32, -bound, bound)
    bv = jax.random.uniform(kbv, (D,), jnp.float32, -bound, bound)

    # One-time parameter prep (hoisted out of the call path).
    w_stack, b_stack = prepare_attention_params(wq, bq, wk, bk, wv, bv)

    ref_out, ref_w = _reference(x, wq, bq, wk, bk, wv, bv)

    # f32 path (exact-tolerance check on all generations).
    out, attn_w = attention_block_prepared(x, w_stack, b_stack,
                                           compute_dtype=jnp.float32)
    jax.block_until_ready((out, attn_w))
    assert out.shape == (B, S, D) and attn_w.shape == (B, S, S)
    assert jnp.allclose(out, ref_out, atol=1e-4, rtol=1e-4)
    assert jnp.allclose(attn_w, ref_w, atol=1e-4, rtol=1e-4)

    # bf16 MXU-operand path (v6e/v7x feedback); softmax math stays f32.
    out_bf, attn_bf = attention_block_prepared(x, w_stack, b_stack,
                                               compute_dtype=jnp.bfloat16)
    jax.block_until_ready((out_bf, attn_bf))
    assert jnp.allclose(out_bf, ref_out, atol=5e-2, rtol=5e-2)
    assert jnp.allclose(attn_bf, ref_w, atol=5e-2, rtol=5e-2)

    print("KERNEL_OK")
</pallas_src>

<mosaic_0001>
module attributes {stable_mosaic.version = 11 : i64} {
  func.func @_attention_kernel(%arg0: i32, %arg1: i32, %arg2: memref<1x8x32xf32, #tpu.memory_space<vmem>>, %arg3: memref<1x8x32xf32, #tpu.memory_space<vmem>>, %arg4: memref<3x32x32xf32, #tpu.memory_space<vmem>>, %arg5: memref<3x1x32xf32, #tpu.memory_space<vmem>>, %arg6: memref<1x8x32xf32, #tpu.memory_space<vmem>>, %arg7: memref<1x8x8xf32, #tpu.memory_space<vmem>>, %arg8: memref<1x32x8xf32, #tpu.memory_space<vmem>>, %arg9: memref<1x8x32xf32, #tpu.memory_space<vmem>>) attributes {dimension_semantics = [#tpu.dimension_semantics<parallel>, #tpu.dimension_semantics<arbitrary>], iteration_bounds = array<i64: 2, 1>, scalar_prefetch = 0 : i64, scratch_operands = 2 : i64, tpu.core_type = #tpu.core_type<tc>, window_params = [{transform_indices = @transform_0, window_bounds = array<i64: 1, 8, 32>}, {transform_indices = @transform_1, window_bounds = array<i64: 1, 8, 32>}, {pipeline_mode = #tpu.pipeline_mode<synchronous>, transform_indices = @transform_2, window_bounds = array<i64: 3, 32, 32>}, {pipeline_mode = #tpu.pipeline_mode<synchronous>, transform_indices = @transform_3, window_bounds = array<i64: 3, 1, 32>}, {transform_indices = @transform_4, window_bounds = array<i64: 1, 8, 32>}, {transform_indices = @transform_5, window_bounds = array<i64: 1, 8, 8>}]} {
    %c0_i32 = arith.constant 0 : i32
    %0 = arith.cmpi eq, %arg1, %c0_i32 : i32
    %1 = arith.extui %0 : i1 to i32
    %c0_i32_0 = arith.constant 0 : i32
    %2 = arith.cmpi ne, %1, %c0_i32_0 : i32
    scf.if %2 {
      %c0_26 = arith.constant 0 : index
      %c0_27 = arith.constant 0 : index
      %c0_28 = arith.constant 0 : index
      %32 = vector.load %arg3[%c0_26, %c0_27, %c0_28] : memref<1x8x32xf32, #tpu.memory_space<vmem>>, vector<1x8x32xf32>
      %c1 = arith.constant 1 : index
      %c0_29 = arith.constant 0 : index
      %c0_30 = arith.constant 0 : index
      %33 = vector.load %arg4[%c1, %c0_29, %c0_30] : memref<3x32x32xf32, #tpu.memory_space<vmem>>, vector<1x32x32xf32>
      %34 = vector.shape_cast %33 : vector<1x32x32xf32> to vector<32x32xf32>
      %cst_31 = arith.constant dense<0.000000e+00> : vector<1x8x32xf32>
      %35 = tpu.matmul %32, %34, %cst_31 {dimension_numbers = #tpu.dot_dimension_numbers<[2], [0], [0, 1], [1], [0, 0, 0, 1, 1, 1], [], []>} : vector<1x8x32xf32>, vector<32x32xf32>, vector<1x8x32xf32> -> vector<1x8x32xf32>
      %c1_32 = arith.constant 1 : index
      %c0_33 = arith.constant 0 : index
      %c0_34 = arith.constant 0 : index
      %36 = vector.load %arg5[%c1_32, %c0_33, %c0_34] : memref<3x1x32xf32, #tpu.memory_space<vmem>>, vector<1x1x32xf32>
      %37 = vector.shape_cast %36 : vector<1x1x32xf32> to vector<1x32xf32>
      %38 = vector.shape_cast %37 : vector<1x32xf32> to vector<1x1x32xf32>
      %39 = vector.broadcast %38 : vector<1x1x32xf32> to vector<1x8x32xf32>
      %40 = arith.addf %35, %39 : vector<1x8x32xf32>
      %c2 = arith.constant 2 : index
      %c0_35 = arith.constant 0 : index
      %c0_36 = arith.constant 0 : index
      %41 = vector.load %arg4[%c2, %c0_35, %c0_36] : memref<3x32x32xf32, #tpu.memory_space<vmem>>, vector<1x32x32xf32>
      %42 = vector.shape_cast %41 : vector<1x32x32xf32> to vector<32x32xf32>
      %cst_37 = arith.constant dense<0.000000e+00> : vector<1x8x32xf32>
      %43 = tpu.matmul %32, %42, %cst_37 {dimension_numbers = #tpu.dot_dimension_numbers<[2], [0], [0, 1], [1], [0, 0, 0, 1, 1, 1], [], []>} : vector<1x8x32xf32>, vector<32x32xf32>, vector<1x8x32xf32> -> vector<1x8x32xf32>
      %c2_38 = arith.constant 2 : index
      %c0_39 = arith.constant 0 : index
      %c0_40 = arith.constant 0 : index
      %44 = vector.load %arg5[%c2_38, %c0_39, %c0_40] : memref<3x1x32xf32, #tpu.memory_space<vmem>>, vector<1x1x32xf32>
      %45 = vector.shape_cast %44 : vector<1x1x32xf32> to vector<1x32xf32>
      %46 = vector.shape_cast %45 : vector<1x32xf32> to vector<1x1x32xf32>
      %47 = vector.broadcast %46 : vector<1x1x32xf32> to vector<1x8x32xf32>
      %48 = arith.addf %43, %47 : vector<1x8x32xf32>
      %49 = tpu.transpose %40, [0, 2, 1] : vector<1x8x32xf32> -> vector<1x32x8xf32>
      %c0_41 = arith.constant 0 : index
      %c0_42 = arith.constant 0 : index
      %c0_43 = arith.constant 0 : index
      %50 = vector.load %arg8[%c0_41, %c0_42, %c0_43] : memref<1x32x8xf32, #tpu.memory_space<vmem>>, vector<1x32x8xf32>
      tpu.vector_store %arg8[%c0_41, %c0_42, %c0_43], %49 {strides = array<i32>} : memref<1x32x8xf32, #tpu.memory_space<vmem>>, vector<1x32x8xf32>,
      %c0_44 = arith.constant 0 : index
      %c0_45 = arith.constant 0 : index
      %c0_46 = arith.constant 0 : index
      %51 = vector.load %arg9[%c0_44, %c0_45, %c0_46] : memref<1x8x32xf32, #tpu.memory_space<vmem>>, vector<1x8x32xf32>
      tpu.vector_store %arg9[%c0_44, %c0_45, %c0_46], %48 {strides = array<i32>} : memref<1x8x32xf32, #tpu.memory_space<vmem>>, vector<1x8x32xf32>,
    } else {
    }
    %c0 = arith.constant 0 : index
    %c0_1 = arith.constant 0 : index
    %c0_2 = arith.constant 0 : index
    %3 = vector.load %arg2[%c0, %c0_1, %c0_2] : memref<1x8x32xf32, #tpu.memory_space<vmem>>, vector<1x8x32xf32>
    %c0_3 = arith.constant 0 : index
    %c0_4 = arith.constant 0 : index
    %c0_5 = arith.constant 0 : index
    %4 = vector.load %arg4[%c0_3, %c0_4, %c0_5] : memref<3x32x32xf32, #tpu.memory_space<vmem>>, vector<1x32x32xf32>
    %5 = vector.shape_cast %4 : vector<1x32x32xf32> to vector<32x32xf32>
    %cst = arith.constant dense<0.000000e+00> : vector<1x8x32xf32>
    %6 = tpu.matmul %3, %5, %cst {dimension_numbers = #tpu.dot_dimension_numbers<[2], [0], [0, 1], [1], [0, 0, 0, 1, 1, 1], [], []>} : vector<1x8x32xf32>, vector<32x32xf32>, vector<1x8x32xf32> -> vector<1x8x32xf32>
    %c0_6 = arith.constant 0 : index
    %c0_7 = arith.constant 0 : index
    %c0_8 = arith.constant 0 : index
    %7 = vector.load %arg5[%c0_6, %c0_7, %c0_8] : memref<3x1x32xf32, #tpu.memory_space<vmem>>, vector<1x1x32xf32>
    %8 = vector.shape_cast %7 : vector<1x1x32xf32> to vector<1x32xf32>
    %9 = vector.shape_cast %8 : vector<1x32xf32> to vector<1x1x32xf32>
    %10 = vector.broadcast %9 : vector<1x1x32xf32> to vector<1x8x32xf32>
    %11 = arith.addf %6, %10 : vector<1x8x32xf32>
    %c0_9 = arith.constant 0 : index
    %c0_10 = arith.constant 0 : index
    %c0_11 = arith.constant 0 : index
    %12 = vector.load %arg8[%c0_9, %c0_10, %c0_11] : memref<1x32x8xf32, #tpu.memory_space<vmem>>, vector<1x32x8xf32>
    %cst_12 = arith.constant dense<0.000000e+00> : vector<1x8x8xf32>
    %13 = tpu.matmul %11, %12, %cst_12 {dimension_numbers = #tpu.dot_dimension_numbers<[2], [1], [1], [2], [0, 0, 0, 1, 1, 2], [0], [0]>} : vector<1x8x32xf32>, vector<1x32x8xf32>, vector<1x8x8xf32> -> vector<1x8x8xf32>
    %cst_13 = arith.constant dense<0xFF800000> : vector<1x8xf32>
    %14 = vector.multi_reduction <maximumf>, %13, %cst_13 [2] : vector<1x8x8xf32> to vector<1x8xf32>
    %15 = vector.shape_cast %14 : vector<1x8xf32> to vector<1x8x1xf32>
    %16 = vector.broadcast %15 : vector<1x8x1xf32> to vector<1x8x8xf32>
    %17 = arith.subf %13, %16 : vector<1x8x8xf32>
    %18 = math.exp %17 : vector<1x8x8xf32>
    %cst_14 = arith.constant dense<0.000000e+00> : vector<1x8xf32>
    %19 = vector.multi_reduction <add>, %18, %cst_14 [2] : vector<1x8x8xf32> to vector<1x8xf32>
    %20 = vector.shape_cast %19 : vector<1x8xf32> to vector<1x8x1xf32>
    %21 = tpu.reciprocal %20 {approx = true} : vector<1x8x1xf32> -> vector<1x8x1xf32>
    %22 = arith.mulf %20, %21 : vector<1x8x1xf32>
    %cst_15 = arith.constant 2.000000e+00 : f32
    %23 = vector.broadcast %cst_15 : f32 to vector<1x8x1xf32>
    %24 = arith.subf %23, %22 : vector<1x8x1xf32>
    %25 = arith.mulf %21, %24 : vector<1x8x1xf32>
    %26 = vector.broadcast %25 : vector<1x8x1xf32> to vector<1x8x8xf32>
    %27 = arith.mulf %18, %26 : vector<1x8x8xf32>
    %c0_16 = arith.constant 0 : index
    %c0_17 = arith.constant 0 : index
    %c0_18 = arith.constant 0 : index
    %28 = vector.load %arg9[%c0_16, %c0_17, %c0_18] : memref<1x8x32xf32, #tpu.memory_space<vmem>>, vector<1x8x32xf32>
    %cst_19 = arith.constant dense<0.000000e+00> : vector<1x8x32xf32>
    %29 = tpu.matmul %27, %28, %cst_19 {dimension_numbers = #tpu.dot_dimension_numbers<[2], [1], [1], [2], [0, 0, 0, 1, 1, 2], [0], [0]>} : vector<1x8x8xf32>, vector<1x8x32xf32>, vector<1x8x32xf32> -> vector<1x8x32xf32>
    %c0_20 = arith.constant 0 : index
    %c0_21 = arith.constant 0 : index
    %c0_22 = arith.constant 0 : index
    %30 = vector.load %arg6[%c0_20, %c0_21, %c0_22] : memref<1x8x32xf32, #tpu.memory_space<vmem>>, vector<1x8x32xf32>
    tpu.vector_store %arg6[%c0_20, %c0_21, %c0_22], %29 {strides = array<i32>} : memref<1x8x32xf32, #tpu.memory_space<vmem>>, vector<1x8x32xf32>,
    %c0_23 = arith.constant 0 : index
    %c0_24 = arith.constant 0 : index
    %c0_25 = arith.constant 0 : index
    %31 = vector.load %arg7[%c0_23, %c0_24, %c0_25] : memref<1x8x8xf32, #tpu.memory_space<vmem>>, vector<1x8x8xf32>
    tpu.vector_store %arg7[%c0_23, %c0_24, %c0_25], %27 {strides = array<i32>} : memref<1x8x8xf32, #tpu.memory_space<vmem>>, vector<1x8x8xf32>,
    return
  }
  func.func @transform_0(%arg0: i32, %arg1: i32) -> (i32, i32, i32) {
    %c0_i32 = arith.constant 0 : i32
    %c0_i32_0 = arith.constant 0 : i32
    return %arg0, %arg1, %c0_i32 : i32, i32, i32
  }
  func.func @transform_1(%arg0: i32, %arg1: i32) -> (i32, i32, i32) {
    %c0_i32 = arith.constant 0 : i32
    %c0_i32_0 = arith.constant 0 : i32
    %c0_i32_1 = arith.constant 0 : i32
    return %arg0, %c0_i32, %c0_i32_0 : i32, i32, i32
  }
  func.func @transform_2(%arg0: i32, %arg1: i32) -> (i32, i32, i32) {
    %c0_i32 = arith.constant 0 : i32
    %c0_i32_0 = arith.constant 0 : i32
    %c0_i32_1 = arith.constant 0 : i32
    %c0_i32_2 = arith.constant 0 : i32
    return %c0_i32, %c0_i32_0, %c0_i32_1 : i32, i32, i32
  }
  func.func @transform_3(%arg0: i32, %arg1: i32) -> (i32, i32, i32) {
    %c0_i32 = arith.constant 0 : i32
    %c0_i32_0 = arith.constant 0 : i32
    %c0_i32_1 = arith.constant 0 : i32
    %c0_i32_2 = arith.constant 0 : i32
    return %c0_i32, %c0_i32_0, %c0_i32_1 : i32, i32, i32
  }
  func.func @transform_4(%arg0: i32, %arg1: i32) -> (i32, i32, i32) {
    %c0_i32 = arith.constant 0 : i32
    %c0_i32_0 = arith.constant 0 : i32
    return %arg0, %arg1, %c0_i32 : i32, i32, i32
  }
  func.func @transform_5(%arg0: i32, %arg1: i32) -> (i32, i32, i32) {
    %c0_i32 = arith.constant 0 : i32
    %c0_i32_0 = arith.constant 0 : i32
    return %arg0, %arg1, %c0_i32 : i32, i32, i32
  }
}

</mosaic_0001>

<llo_original>
// kernel: tpu_custom_call.1
$region0: #{tpu_custom_call.1}
  #allocation0 [shape = 'u32[]', space=smem, size = 0x4, offset = 0x4, fixed_abs, tag = 'smem constant byte address 0x4 - core index']
  #allocation1 [shape = 'u32[144,128]{1,0:T(1,128)}', space=vmem, size = 0x12000, scoped, tag = 'internal scratch']
  #allocation2 [shape = 'f32[1,32,8]{2,1,0:T(8,128)}', space=vmem, size = 0x4000, scoped, tag = 'scratch operand']
  #allocation3 [shape = 'f32[1,8,32]{2,1,0:T(8,128)}', space=vmem, size = 0x1000, scoped, tag = 'scratch operand']
  %s0 = inlined_call_operand.hbm [shape: f32[2,8,32], index: 0, kind: input, shape index: {}]
  %s1 = inlined_call_operand.hbm [shape: f32[2,8,32], index: 1, kind: input, shape index: {}]
  %s2 = inlined_call_operand.hbm [shape: f32[3,32,32], index: 2, kind: input, shape index: {}]
  %s3 = inlined_call_operand.vmem [shape: f32[3,1,32], index: 3, kind: input, shape index: {}]
  %s4 = inlined_call_operand.hbm [shape: f32[2,8,32], index: 4, kind: output, shape index: {0}]
  %s5 = inlined_call_operand.hbm [shape: f32[2,8,8], index: 5, kind: output, shape index: {1}]
  %6 = xla_tuple %s4, %s5
  %s7 = sld [smem:[#allocation0]]
  $region73: #{tpu_custom_call.1} parent=0
    _
  %s9 = ssub.s32 1, %s7
  %s10 = scalar_select 0, %s9, %s7
  $region1: #{tpu_custom_call.1} parent=0
    #allocation4 [shape = 'u8[8192]{0}', space=vmem, size = 0x2000, scoped, tag = 'input window, operand 0']
    #allocation5 [shape = 's32[2]{0}', space=sflag, size = 0x8, scoped, tag = 'scoped memory for tpu_custom_call.1']
    #allocation6 [shape = 's32[2]{0}', space=sflag, size = 0x8, scoped, tag = 'scoped memory for tpu_custom_call.1']
    #allocation7 [shape = 'u8[8192]{0}', space=vmem, size = 0x2000, scoped, tag = 'input window, operand 1']
    #allocation8 [shape = 's32[2]{0}', space=sflag, size = 0x8, scoped, tag = 'scoped memory for tpu_custom_call.1']
    #allocation9 [shape = 'u8[49152]{0}', space=vmem, size = 0xc000, scoped, tag = 'input window, operand 2, single buffered']
    #allocation10 [shape = 'u8[8192]{0}', space=vmem, size = 0x2000, scoped, tag = 'output window, operand 0']
    #allocation11 [shape = 'u8[8192]{0}', space=vmem, size = 0x2000, scoped, tag = 'output window, operand 1']
    #allocation12 [shape = 's32[2]{0}', space=sflag, size = 0x8, scoped, tag = 'scoped memory for tpu_custom_call.1']
    %11 = vsyncpa [#allocation5], 0
    %s12 = scalar_lea.sflag [#allocation5], 1
    %13 = vsyncpa %s12, 0
    %14 = vsyncpa [#allocation8], 0
    %s15 = scalar_lea.sflag [#allocation8], 1
    %16 = vsyncpa %s15, 0
    %17 = vsyncpa [#allocation6], 0
    %s18 = scalar_lea.sflag [#allocation6], 1
    %19 = vsyncpa %s18, 0
    %20 = vsyncpa [#allocation12], 0
    %s21 = scalar_lea.sflag [#allocation12], 1
    %22 = vsyncpa %s21, 0
    loop: start=0, step=1, limit=4
    $region2: #{tpu_custom_call.1} parent=1 // loop_pre_header
      _
    $region3: #{tpu_custom_call.1} parent=1 // loop_header
      %s24 = sphi 0, %s28
      %p25 = scmp.ge.s32.totalorder %s24, 4
      %s31 = sphi 0, %s43
      %s32 = sphi 0, %s39
      %s33 = sphi 0, %s31
      %s34 = sphi 0, %s32
      %s35 = sphi 0, %s33
      %s36 = sphi 0, %s34
      %s48 = sphi 0, %s50
      %s51 = sphi 0, %s48
      %s52 = sphi 0, %s51
      %s68 = sphi 0, %s52
      %s74 = sphi 0, %s76
      %s77 = sphi 0, %s74
      %s78 = sphi 0, %s77
      %s94 = sphi 0, %s78
      %s98 = sphi 0, %s98
      %s100 = sphi 0, %s98
      %s101 = sphi 0, %s100
      %s115 = sphi 0, %s101
      %s119 = sphi 0, %s119
      %s121 = sphi 0, %s119
      %s122 = sphi 0, %s121
      %s136 = sphi 0, %s122
      %s144 = sphi 0, %s146
      %s147 = sphi 0, %s144
      %s148 = sphi 0, %s147
      %s164 = sphi 0, %s148
      %s172 = sphi 0, %s174
      %s175 = sphi 0, %s172
      %s176 = sphi 0, %s175
      %s192 = sphi 0, %s176
    $region4: #{tpu_custom_call.1} parent=1 // loop_header_branch
      %27 = sbr.rel (%p25) target = $region8
    $region5: #{tpu_custom_call.1} parent=1 // loop_body
      %s29 = ssub.s32 %s24, 1
      %s30 = ssub.s32 %s24, 2
      %s37 = sadd.s32 1, %s32
      %p38 = scmp.ge.s32.totalorder %s37, 1
      %s39 = scalar_select %p38, 0, %s37
      %s40 = sadd.s32 1, %s31
      %s41 = scalar_select %p38, %s40, %s31
      %p42 = scmp.ge.s32.totalorder %s41, 2
      %s43 = scalar_select %p42, 0, %s41
      %s44 = ssub.s32 %s31, %s43
      %s45 = ssub.s32 %s32, %s39
      %s46 = sor.u32 %s44, %s45
      %p47 = scmp.eq.s32.totalorder %s46, 0
      %s49 = sadd.s32 %s48, 1
      %s50 = scalar_select %p47, %s48, %s49
      %p53 = pneg %p47
      %p54 = scmp.eq.s32.totalorder %s24, 1
      %p55 = por %p53, %p54
      %p56 = scmp.ne.s32.totalorder %s48, %s51
      %p57 = scmp.eq.s32.totalorder %s24, 0
      %p58 = por %p56, %p57
      %p59 = scmp.ne.s32.totalorder %s48, %s51
      %p60 = scmp.eq.s32.totalorder %s29, 1
      %p61 = por %p59, %p60
      %p62 = scmp.ne.s32.totalorder %s51, %s52
      %p63 = scmp.eq.s32.totalorder %s29, 0
      %p64 = por %p62, %p63
      %p65 = scmp.ne.s32.totalorder %s51, %s52
      %p66 = scmp.eq.s32.totalorder %s30, 1
      %p67 = por %p65, %p66
      %p69 = scmp.ne.s32.totalorder %s52, %s68
      %p70 = scmp.eq.s32.totalorder %s30, 0
      %p71 = por %p69, %p70
      %s72 = ssub.s32 %s31, %s43
      %p73 = scmp.eq.s32.totalorder %s72, 0
      %s75 = sadd.s32 %s74, 1
      %s76 = scalar_select %p73, %s74, %s75
      %p79 = pneg %p73
      %p80 = scmp.eq.s32.totalorder %s24, 1
      %p81 = por %p79, %p80
      %p82 = scmp.ne.s32.totalorder %s74, %s77
      %p83 = scmp.eq.s32.totalorder %s24, 0
      %p84 = por %p82, %p83
      %p85 = scmp.ne.s32.totalorder %s74, %s77
      %p86 = scmp.eq.s32.totalorder %s29, 1
      %p87 = por %p85, %p86
      %p88 = scmp.ne.s32.totalorder %s77, %s78
      %p89 = scmp.eq.s32.totalorder %s29, 0
      %p90 = por %p88, %p89
      %p91 = scmp.ne.s32.totalorder %s77, %s78
      %p92 = scmp.eq.s32.totalorder %s30, 1
      %p93 = por %p91, %p92
      %p95 = scmp.ne.s32.totalorder %s78, %s94
      %p96 = scmp.eq.s32.totalorder %s30, 0
      %p97 = por %p95, %p96
      %s99 = sadd.s32 %s98, 1
      %p102 = scmp.eq.s32.totalorder %s24, 1
      %p103 = scmp.ne.s32.totalorder %s98, %s100
      %p104 = scmp.eq.s32.totalorder %s24, 0
      %p105 = por %p103, %p104
      %p106 = scmp.ne.s32.totalorder %s98, %s100
      %p107 = scmp.eq.s32.totalorder %s29, 1
      %p108 = por %p106, %p107
      %p109 = scmp.ne.s32.totalorder %s100, %s101
      %p110 = scmp.eq.s32.totalorder %s29, 0
      %p111 = por %p109, %p110
      %p112 = scmp.ne.s32.totalorder %s100, %s101
      %p113 = scmp.eq.s32.totalorder %s30, 1
      %p114 = por %p112, %p113
      %p116 = scmp.ne.s32.totalorder %s101, %s115
      %p117 = scmp.eq.s32.totalorder %s30, 0
      %p118 = por %p116, %p117
      %s120 = sadd.s32 %s119, 1
      %p123 = scmp.eq.s32.totalorder %s24, 1
      %p124 = scmp.ne.s32.totalorder %s119, %s121
      %p125 = scmp.eq.s32.totalorder %s24, 0
      %p126 = por %p124, %p125
      %p127 = scmp.ne.s32.totalorder %s119, %s121
      %p128 = scmp.eq.s32.totalorder %s29, 1
      %p129 = por %p127, %p128
      %p130 = scmp.ne.s32.totalorder %s121, %s122
      %p131 = scmp.eq.s32.totalorder %s29, 0
      %p132 = por %p130, %p131
      %p133 = scmp.ne.s32.totalorder %s121, %s122
      %p134 = scmp.eq.s32.totalorder %s30, 1
      %p135 = por %p133, %p134
      %p137 = scmp.ne.s32.totalorder %s122, %s136
      %p138 = scmp.eq.s32.totalorder %s30, 0
      %p139 = por %p137, %p138
      %s140 = ssub.s32 %s31, %s43
      %s141 = ssub.s32 %s32, %s39
      %s142 = sor.u32 %s140, %s141
      %p143 = scmp.eq.s32.totalorder %s142, 0
      %s145 = sadd.s32 %s144, 1
      %s146 = scalar_select %p143, %s144, %s145
      %p149 = pneg %p143
      %p150 = scmp.eq.s32.totalorder %s24, 1
      %p151 = por %p149, %p150
      %p152 = scmp.ne.s32.totalorder %s144, %s147
      %p153 = scmp.eq.s32.totalorder %s24, 0
      %p154 = por %p152, %p153
      %p155 = scmp.ne.s32.totalorder %s144, %s147
      %p156 = scmp.eq.s32.totalorder %s29, 1
      %p157 = por %p155, %p156
      %p158 = scmp.ne.s32.totalorder %s147, %s148
      %p159 = scmp.eq.s32.totalorder %s29, 0
      %p160 = por %p158, %p159
      %p161 = scmp.ne.s32.totalorder %s147, %s148
      %p162 = scmp.eq.s32.totalorder %s30, 1
      %p163 = por %p161, %p162
      %p165 = scmp.ne.s32.totalorder %s148, %s164
      %p166 = scmp.eq.s32.totalorder %s30, 0
      %p167 = por %p165, %p166
      %s168 = ssub.s32 %s31, %s43
      %s169 = ssub.s32 %s32, %s39
      %s170 = sor.u32 %s168, %s169
      %p171 = scmp.eq.s32.totalorder %s170, 0
      %s173 = sadd.s32 %s172, 1
      %s174 = scalar_select %p171, %s172, %s173
      %p177 = pneg %p171
      %p178 = scmp.eq.s32.totalorder %s24, 1
      %p179 = por %p177, %p178
      %p180 = scmp.ne.s32.totalorder %s172, %s175
      %p181 = scmp.eq.s32.totalorder %s24, 0
      %p182 = por %p180, %p181
      %p183 = scmp.ne.s32.totalorder %s172, %s175
      %p184 = scmp.eq.s32.totalorder %s29, 1
      %p185 = por %p183, %p184
      %p186 = scmp.ne.s32.totalorder %s175, %s176
      %p187 = scmp.eq.s32.totalorder %s29, 0
      %p188 = por %p186, %p187
      %p189 = scmp.ne.s32.totalorder %s175, %s176
      %p190 = scmp.eq.s32.totalorder %s30, 1
      %p191 = por %p189, %p190
      %p193 = scmp.ne.s32.totalorder %s176, %s192
      %p194 = scmp.eq.s32.totalorder %s30, 0
      %p195 = por %p193, %p194
      %p196 = scmp.le.s32.totalorder 1, %s24
      %p197 = scmp.lt.s32.totalorder %s24, 3
      %p198 = pnand %p196, %p197
      %p199 = pneg %p198
      // Predicated region
      $region9: #{tpu_custom_call.1} parent=5 // pred_check
        _
      $region10: #{tpu_custom_call.1} parent=5 // pred_check_branch
        %201 = sbr.rel (%p198) target = $region12
      $region11: #{tpu_custom_call.1} parent=5 // pred_region
        %s202 = ssub.s32 %s24, 1
        // Predicated region
        $region13: #{tpu_custom_call.1} parent=11 // pred_check
          %p203 = pneg %p111
        $region14: #{tpu_custom_call.1} parent=11 // pred_check_branch
          %205 = sbr.rel (%p203) target = $region16
        $region15: #{tpu_custom_call.1} parent=11 // pred_region
          %s207 = ssub.s32 1536, 1536
          %208 = vsyncadd [#allocation8], %s207
          %s209 = sshll.u32 [#allocation9], 4
          %s210 = int_to_ptr.vmem [resolvable:$true] %s209
          %215 = dma.hbm_to_vmem [thread:$0]  %s2, 1536, %s210, [#allocation8], 128, 128, 8
        $region16: #{tpu_custom_call.1} parent=11 // pred_fallthru
          _
        // Predicated region
        $region17: #{tpu_custom_call.1} parent=11 // pred_check
          %p216 = pneg %p132
        $region18: #{tpu_custom_call.1} parent=11 // pred_check_branch
          %218 = sbr.rel (%p216) target = $region20
        $region19: #{tpu_custom_call.1} parent=11 // pred_region
          _
        $region20: #{tpu_custom_call.1} parent=11 // pred_fallthru
          _
      $region12: #{tpu_custom_call.1} parent=5 // pred_fallthru
        _
      %p219 = scmp.lt.s32.totalorder %s24, 2
      // Predicated region
      $region21: #{tpu_custom_call.1} parent=5 // pred_check
        %p220 = pneg %p219
      $region22: #{tpu_custom_call.1} parent=5 // pred_check_branch
        %222 = sbr.rel (%p220) target = $region24
      $region23: #{tpu_custom_call.1} parent=5 // pred_region
        // Predicated region
        $region25: #{tpu_custom_call.1} parent=23 // pred_check
          %p223 = pneg %p58
        $region26: #{tpu_custom_call.1} parent=23 // pred_check_branch
          %225 = sbr.rel (%p223) target = $region28
        $region27: #{tpu_custom_call.1} parent=23 // pred_region
          %s226 = sand.u32 %s48, 1
          %s227 = scalar_lea.sflag [#allocation5], %s226
          %s228 = sand.u32 %s48, 1
          %s229 = smul.addr %s228, 8
          %s230 = scalar_lea.vmem [#allocation4], %s229
          %s232 = ssub.s32 128, 128
          %233 = vsyncadd %s227, %s232
          %s234 = sadd.s32 %s32, %s31
          %s235 = smul.addr %s234, 128
          %s236 = scalar_lea.hbm %s0, %s235
          %s238 = sshll.u32 %s230, 4
          %s239 = int_to_ptr.vmem [resolvable:$true] %s238
          %241 = dma.hbm_to_vmem [thread:$0]  %s236, 128, %s239, %s227
        $region28: #{tpu_custom_call.1} parent=23 // pred_fallthru
          _
        // Predicated region
        $region29: #{tpu_custom_call.1} parent=23 // pred_check
          %p242 = pneg %p84
        $region30: #{tpu_custom_call.1} parent=23 // pred_check_branch
          %244 = sbr.rel (%p242) target = $region32
        $region31: #{tpu_custom_call.1} parent=23 // pred_region
          %s245 = sand.u32 %s24, 1
          %s246 = scalar_lea.sflag [#allocation8], %s245
          %s247 = sand.u32 %s74, 1
          %s248 = smul.addr %s247, 8
          %s249 = scalar_lea.vmem [#allocation7], %s248
          %s251 = ssub.s32 128, 128
          %252 = vsyncadd %s246, %s251
          %s253 = smul.addr %s31, 128
          %s254 = scalar_lea.hbm %s1, %s253
          %s256 = sshll.u32 %s249, 4
          %s257 = int_to_ptr.vmem [resolvable:$true] %s256
          %259 = dma.hbm_to_vmem [thread:$0]  %s254, 128, %s257, %s246
        $region32: #{tpu_custom_call.1} parent=23 // pred_fallthru
          _
      $region24: #{tpu_custom_call.1} parent=5 // pred_fallthru
        _
      %p260 = scmp.le.s32.totalorder 1, %s24
      %p261 = scmp.lt.s32.totalorder %s24, 3
      %p262 = pnand %p260, %p261
      %p263 = pneg %p262
      // Predicated region
      $region33: #{tpu_custom_call.1} parent=5 // pred_check
        _
      $region34: #{tpu_custom_call.1} parent=5 // pred_check_branch
        %265 = sbr.rel (%p262) target = $region36
      $region35: #{tpu_custom_call.1} parent=5 // pred_region
        %s266 = ssub.s32 %s24, 1
        %s267 = sand.u32 %s51, 1
        %s268 = scalar_lea.sflag [#allocation5], %s267
        %s269 = sand.u32 %s51, 1
        %s270 = smul.addr %s269, 8
        %s271 = scalar_lea.vmem [#allocation4], %s270
        // Predicated region
        $region37: #{tpu_custom_call.1} parent=35 // pred_check
          %p272 = pneg %p64
        $region38: #{tpu_custom_call.1} parent=35 // pred_check_branch
          %274 = sbr.rel (%p272) target = $region40
        $region39: #{tpu_custom_call.1} parent=35 // pred_region
          %275 = dma.done %s268, 128
        $region40: #{tpu_custom_call.1} parent=35 // pred_fallthru
          _
        %s276 = sand.u32 %s29, 1
        %s277 = scalar_lea.sflag [#allocation8], %s276
        %s278 = sand.u32 %s77, 1
        %s279 = smul.addr %s278, 8
        %s280 = scalar_lea.vmem [#allocation7], %s279
        // Predicated region
        $region41: #{tpu_custom_call.1} parent=35 // pred_check
          %p281 = pneg %p90
        $region42: #{tpu_custom_call.1} parent=35 // pred_check_branch
          %283 = sbr.rel (%p281) target = $region44
        $region43: #{tpu_custom_call.1} parent=35 // pred_region
          %284 = dma.done %s277, 128
        $region44: #{tpu_custom_call.1} parent=35 // pred_fallthru
          _
        // Predicated region
        $region45: #{tpu_custom_call.1} parent=35 // pred_check
          %p285 = pneg %p111
        $region46: #{tpu_custom_call.1} parent=35 // pred_check_branch
          %287 = sbr.rel (%p285) target = $region48
        $region47: #{tpu_custom_call.1} parent=35 // pred_region
          %288 = dma.done [#allocation8], 1536
        $region48: #{tpu_custom_call.1} parent=35 // pred_fallthru
          _
        %s289 = sand.u32 %s51, 1
        %s290 = scalar_lea.sflag [#allocation5], %s289
        %s291 = sand.u32 %s51, 1
        %s292 = smul.addr %s291, 8
        %s293 = scalar_lea.vmem [#allocation4], %s292
        %p294 = pneg %p64
        %p295 = pneg %p61
        %s296 = sand.u32 %s29, 1
        %s297 = scalar_lea.sflag [#allocation8], %s296
        %s298 = sand.u32 %s77, 1
        %s299 = smul.addr %s298, 8
        %s300 = scalar_lea.vmem [#allocation7], %s299
        %p301 = pneg %p90
        %p302 = pneg %p87
        %p303 = pneg %p111
        %p304 = pneg %p108
        %p305 = pneg %p132
        %p306 = pneg %p129
        %p307 = pneg %p160
        %p308 = pneg %p157
        %s309 = sand.u32 %s147, 1
        %s310 = scalar_lea.sflag [#allocation6], %s309
        %s311 = sand.u32 %s147, 1
        %s312 = smul.addr %s311, 8
        %s313 = scalar_lea.vmem [#allocation10], %s312
        %p314 = pneg %p188
        %p315 = pneg %p185
        %s316 = sand.u32 %s175, 1
        %s317 = scalar_lea.sflag [#allocation12], %s316
        %s318 = sand.u32 %s175, 1
        %s319 = smul.addr %s318, 8
        %s320 = scalar_lea.vmem [#allocation11], %s319
        %p321 = scmp.eq.s32.totalorder %s34, 0
        // Predicated region
        $region49: #{tpu_custom_call.1} parent=35 // pred_check
          %p322 = pneg %p321
        $region50: #{tpu_custom_call.1} parent=35 // pred_check_branch
          %324 = sbr.rel (%p322) target = $region52
        $region51: #{tpu_custom_call.1} parent=35 // pred_region
          %v325 = vld [vmem:[%s280] sm:$0xff]
          %s326 = scalar_lea.vmem [#allocation9], 32
          %v327 = vld [vmem:[%s326] sm:$0xff]
          %v328 = vld [vmem:[%s326 + $0x8] sm:$0xff]
          %v329 = vld [vmem:[%s326 + $0x10] sm:$0xff]
          %v330 = vld [vmem:[%s326 + $0x18] sm:$0xff]
          %s331 = scalar_lea.vmem %s3, 1
          %v332 = vld [vmem:[%s331] sm:$0x1]
          %v334 = vlaneseq
          %v335 = vshrl.u32 %v334, 7
          %v336 = vsub.s32 0, %v335
          %v337 = vrot.slane %v332, %v336
          %vm339 = vcmask 261120
          %v341 = vsel %vm339, %v325, 0
          %343 = vmatprep.subr.mxu0 0.0
          %344 = vmatpush1.msra.mxu0 %v327
          %345 = vmatprep.subr.mxu0 0.0
          %346 = vmatpush1.msra.mxu0 %v328
          %347 = vmatprep.subr.mxu0 0.0
          %348 = vmatpush1.msra.mxu0 %v329
          %349 = vmatprep.subr.mxu0 0.0
          %350 = vmatpush1.msra.mxu0 %v330
          %351 = vmatprep.subr.mxu0 0.0
          %352 = vmatpush1.msra.mxu0 0.0
          %353 = vmatprep.subr.mxu0 0.0
          %354 = vmatpush1.msra.mxu0 0.0
          %355 = vmatprep.subr.mxu0 0.0
          %356 = vmatpush1.msra.mxu0 0.0
          %357 = vmatprep.subr.mxu0 0.0
          %358 = vmatpush1.msra.mxu0 0.0
          %359 = vmatprep.subr.mxu0 0.0
          %360 = vmatpush1.msra.mxu0 0.0
          %361 = vmatprep.subr.mxu0 0.0
          %362 = vmatpush1.msra.mxu0 0.0
          %363 = vmatprep.subr.mxu0 0.0
          %364 = vmatpush1.msra.mxu0 0.0
          %365 = vmatprep.subr.mxu0 0.0
          %366 = vmatpush1.msra.mxu0 0.0
          %367 = vmatprep.subr.mxu0 0.0
          %368 = vmatpush1.msra.mxu0 0.0
          %369 = vmatprep.subr.mxu0 0.0
          %370 = vmatpush1.msra.mxu0 0.0
          %371 = vmatprep.subr.mxu0 0.0
          %372 = vmatpush1.msra.mxu0 0.0
          %373 = vmatprep.subr.mxu0 0.0
          %374 = vmatpush1.msra.mxu0 0.0
          %375 = vmatprep.subr.mxu0 0.0
          %376 = vmatpush1.msra.mxu0 0.0
          %377 = vmatprep.subr.mxu0 0.0
          %378 = vmatpush1.msra.mxu0 0.0
          %379 = vmatprep.subr.mxu0 0.0
          %380 = vmatpush1.msra.mxu0 0.0
          %381 = vmatprep.subr.mxu0 0.0
          %382 = vmatpush1.msra.mxu0 0.0
          %383 = vmatprep.subr.mxu0 0.0
          %384 = vmatpush1.msra.mxu0 0.0
          %385 = vmatprep.subr.mxu0 0.0
          %386 = vmatpush1.msra.mxu0 0.0
          %387 = vmatprep.subr.mxu0 0.0
          %388 = vmatpush1.msra.mxu0 0.0
          %389 = vmatprep.subr.mxu0 0.0
          %390 = vmatpush1.msra.mxu0 0.0
          %391 = vmatprep.subr.mxu0 0.0
          %392 = vmatpush1.msra.mxu0 0.0
          %393 = vmatprep.subr.mxu0 0.0
          %394 = vmatpush1.msra.mxu0 0.0
          %395 = vmatprep.subr.mxu0 0.0
          %396 = vmatpush1.msra.mxu0 0.0
          %397 = vmatprep.subr.mxu0 0.0
          %398 = vmatpush1.msra.mxu0 0.0
          %399 = vmatprep.subr.mxu0 0.0
          %400 = vmatpush1.msra.mxu0 0.0
          %401 = vmatprep.subr.mxu0 0.0
          %402 = vmatpush1.msra.mxu0 0.0
          %403 = vmatprep.subr.mxu0 0.0
          %404 = vmatpush1.msra.mxu0 0.0
          %405 = vmatprep.subr.mxu0 0.0
          %406 = vmatpush1.msra.mxu0 0.0
          %407 = vmatprep.mubr.f32.mxu0 0.0
          %408 = vmatmul.mubr.f32.gmra.mrb[0].mxu0 %v341
          %v409 = vpop.f32.mrb[0].mxu0
          %v410 = vadd.f32 %v337, %v409
          %v411 = vpop.f32.mrb[0].mxu0
          %412 = vdwg.mxu0
          %s413 = scalar_lea.vmem [#allocation9], 64
          %v414 = vld [vmem:[%s413] sm:$0xff]
          %v415 = vld [vmem:[%s413 + $0x8] sm:$0xff]
          %v416 = vld [vmem:[%s413 + $0x10] sm:$0xff]
          %v417 = vld [vmem:[%s413 + $0x18] sm:$0xff]
          %s418 = scalar_lea.vmem %s3, 2
          %v419 = vld [vmem:[%s418] sm:$0x1]
          %v421 = vlaneseq
          %v422 = vshrl.u32 %v421, 7
          %v423 = vsub.s32 0, %v422
          %v424 = vrot.slane %v419, %v423
          %426 = vmatprep.subr.mxu0 0.0
          %427 = vmatpush1.msra.mxu0 %v414
          %428 = vmatprep.subr.mxu0 0.0
          %429 = vmatpush1.msra.mxu0 %v415
          %430 = vmatprep.subr.mxu0 0.0
          %431 = vmatpush1.msra.mxu0 %v416
          %432 = vmatprep.subr.mxu0 0.0
          %433 = vmatpush1.msra.mxu0 %v417
          %434 = vmatprep.subr.mxu0 0.0
          %435 = vmatpush1.msra.mxu0 0.0
          %436 = vmatprep.subr.mxu0 0.0
          %437 = vmatpush1.msra.mxu0 0.0
          %438 = vmatprep.subr.mxu0 0.0
          %439 = vmatpush1.msra.mxu0 0.0
          %440 = vmatprep.subr.mxu0 0.0
          %441 = vmatpush1.msra.mxu0 0.0
          %442 = vmatprep.subr.mxu0 0.0
          %443 = vmatpush1.msra.mxu0 0.0
          %444 = vmatprep.subr.mxu0 0.0
          %445 = vmatpush1.msra.mxu0 0.0
          %446 = vmatprep.subr.mxu0 0.0
          %447 = vmatpush1.msra.mxu0 0.0
          %448 = vmatprep.subr.mxu0 0.0
          %449 = vmatpush1.msra.mxu0 0.0
          %450 = vmatprep.subr.mxu0 0.0
          %451 = vmatpush1.msra.mxu0 0.0
          %452 = vmatprep.subr.mxu0 0.0
          %453 = vmatpush1.msra.mxu0 0.0
          %454 = vmatprep.subr.mxu0 0.0
          %455 = vmatpush1.msra.mxu0 0.0
          %456 = vmatprep.subr.mxu0 0.0
          %457 = vmatpush1.msra.mxu0 0.0
          %458 = vmatprep.subr.mxu0 0.0
          %459 = vmatpush1.msra.mxu0 0.0
          %460 = vmatprep.subr.mxu0 0.0
          %461 = vmatpush1.msra.mxu0 0.0
          %462 = vmatprep.subr.mxu0 0.0
          %463 = vmatpush1.msra.mxu0 0.0
          %464 = vmatprep.subr.mxu0 0.0
          %465 = vmatpush1.msra.mxu0 0.0
          %466 = vmatprep.subr.mxu0 0.0
          %467 = vmatpush1.msra.mxu0 0.0
          %468 = vmatprep.subr.mxu0 0.0
          %469 = vmatpush1.msra.mxu0 0.0
          %470 = vmatprep.subr.mxu0 0.0
          %471 = vmatpush1.msra.mxu0 0.0
          %472 = vmatprep.subr.mxu0 0.0
          %473 = vmatpush1.msra.mxu0 0.0
          %474 = vmatprep.subr.mxu0 0.0
          %475 = vmatpush1.msra.mxu0 0.0
          %476 = vmatprep.subr.mxu0 0.0
          %477 = vmatpush1.msra.mxu0 0.0
          %478 = vmatprep.subr.mxu0 0.0
          %479 = vmatpush1.msra.mxu0 0.0
          %480 = vmatprep.subr.mxu0 0.0
          %481 = vmatpush1.msra.mxu0 0.0
          %482 = vmatprep.subr.mxu0 0.0
          %483 = vmatpush1.msra.mxu0 0.0
          %484 = vmatprep.subr.mxu0 0.0
          %485 = vmatpush1.msra.mxu0 0.0
          %486 = vmatprep.subr.mxu0 0.0
          %487 = vmatpush1.msra.mxu0 0.0
          %488 = vmatprep.subr.mxu0 0.0
          %489 = vmatpush1.msra.mxu0 0.0
          %490 = vmatprep.mubr.f32.mxu0 0.0
          %491 = vmatmul.mubr.f32.gmra.mrb[0].mxu0 %v341
          %v492 = vpop.f32.mrb[0].mxu0
          %v493 = vadd.f32 %v424, %v492
          %v494 = vpop.f32.mrb[0].mxu0
          %495 = vdwg.mxu0
          %496 = vxpose.xlu0.b32.start [1/16] %v410, 128
          %497 = vxpose.xlu0.b32.cont [2/16] 0.0, 128
          %498 = vxpose.xlu0.b32.cont [3/16] 0.0, 128
          %499 = vxpose.xlu0.b32.cont [4/16] 0.0, 128
          %500 = vxpose.xlu0.b32.cont [5/16] 0.0, 128
          %501 = vxpose.xlu0.b32.cont [6/16] 0.0, 128
          %502 = vxpose.xlu0.b32.cont [7/16] 0.0, 128
          %503 = vxpose.xlu0.b32.cont [8/16] 0.0, 128
          %504 = vxpose.xlu0.b32.cont [9/16] 0.0, 128
          %505 = vxpose.xlu0.b32.cont [10/16] 0.0, 128
          %506 = vxpose.xlu0.b32.cont [11/16] 0.0, 128
          %507 = vxpose.xlu0.b32.cont [12/16] 0.0, 128
          %508 = vxpose.xlu0.b32.cont [13/16] 0.0, 128
          %509 = vxpose.xlu0.b32.cont [14/16] 0.0, 128
          %510 = vxpose.xlu0.b32.cont [15/16] 0.0, 128
          %511 = vxpose.xlu0.b32.end [16/16] 0.0, 128
          %v512 = vpop.trf.xlu0
          %v513 = vpop.trf.xlu0
          %v514 = vpop.trf.xlu0
          %v515 = vpop.trf.xlu0
          %v516 = vpop.trf.xlu0
          %v517 = vpop.trf.xlu0
          %v518 = vpop.trf.xlu0
          %v519 = vpop.trf.xlu0
          %v520 = vpop.trf.xlu0
          %v521 = vpop.trf.xlu0
          %v522 = vpop.trf.xlu0
          %v523 = vpop.trf.xlu0
          %v524 = vpop.trf.xlu0
          %v525 = vpop.trf.xlu0
          %v526 = vpop.trf.xlu0
          %v527 = vpop.trf.xlu0
          %vm528 = vcmask 64512
          %529 = vst.msk [vmem:[#allocation2] sm:$0xff] %vm528, %v512
          %530 = vst.msk [vmem:[#allocation2 + $0x8] sm:$0xff] %vm528, %v513
          %531 = vst.msk [vmem:[#allocation2 + $0x10] sm:$0xff] %vm528, %v514
          %532 = vst.msk [vmem:[#allocation2 + $0x18] sm:$0xff] %vm528, %v515
          %533 = vst.msk [vmem:[#allocation3] sm:$0xff] %vm339, %v493
        $region52: #{tpu_custom_call.1} parent=35 // pred_fallthru
          _
        %v534 = vld [vmem:[%s271] sm:$0xff]
        %v535 = vld [vmem:[#allocation9] sm:$0xff]
        %v536 = vld [vmem:[#allocation9 + $0x8] sm:$0xff]
        %v537 = vld [vmem:[#allocation9 + $0x10] sm:$0xff]
        %v538 = vld [vmem:[#allocation9 + $0x18] sm:$0xff]
        %v539 = vld [vmem:[%s3] sm:$0x1]
        %v541 = vlaneseq
        %v542 = vshrl.u32 %v541, 7
        %v543 = vsub.s32 0, %v542
        %v544 = vrot.slane %v539, %v543
        %vm546 = vcmask 261120
        %v548 = vsel %vm546, %v534, 0
        %550 = vmatprep.subr.mxu0 0.0
        %551 = vmatpush1.msra.mxu0 %v535
        %552 = vmatprep.subr.mxu0 0.0
        %553 = vmatpush1.msra.mxu0 %v536
        %554 = vmatprep.subr.mxu0 0.0
        %555 = vmatpush1.msra.mxu0 %v537
        %556 = vmatprep.subr.mxu0 0.0
        %557 = vmatpush1.msra.mxu0 %v538
        %558 = vmatprep.subr.mxu0 0.0
        %559 = vmatpush1.msra.mxu0 0.0
        %560 = vmatprep.subr.mxu0 0.0
        %561 = vmatpush1.msra.mxu0 0.0
        %562 = vmatprep.subr.mxu0 0.0
        %563 = vmatpush1.msra.mxu0 0.0
        %564 = vmatprep.subr.mxu0 0.0
        %565 = vmatpush1.msra.mxu0 0.0
        %566 = vmatprep.subr.mxu0 0.0
        %567 = vmatpush1.msra.mxu0 0.0
        %568 = vmatprep.subr.mxu0 0.0
        %569 = vmatpush1.msra.mxu0 0.0
        %570 = vmatprep.subr.mxu0 0.0
        %571 = vmatpush1.msra.mxu0 0.0
        %572 = vmatprep.subr.mxu0 0.0
        %573 = vmatpush1.msra.mxu0 0.0
        %574 = vmatprep.subr.mxu0 0.0
        %575 = vmatpush1.msra.mxu0 0.0
        %576 = vmatprep.subr.mxu0 0.0
        %577 = vmatpush1.msra.mxu0 0.0
        %578 = vmatprep.subr.mxu0 0.0
        %579 = vmatpush1.msra.mxu0 0.0
        %580 = vmatprep.subr.mxu0 0.0
        %581 = vmatpush1.msra.mxu0 0.0
        %582 = vmatprep.subr.mxu0 0.0
        %583 = vmatpush1.msra.mxu0 0.0
        %584 = vmatprep.subr.mxu0 0.0
        %585 = vmatpush1.msra.mxu0 0.0
        %586 = vmatprep.subr.mxu0 0.0
        %587 = vmatpush1.msra.mxu0 0.0
        %588 = vmatprep.subr.mxu0 0.0
        %589 = vmatpush1.msra.mxu0 0.0
        %590 = vmatprep.subr.mxu0 0.0
        %591 = vmatpush1.msra.mxu0 0.0
        %592 = vmatprep.subr.mxu0 0.0
        %593 = vmatpush1.msra.mxu0 0.0
        %594 = vmatprep.subr.mxu0 0.0
        %595 = vmatpush1.msra.mxu0 0.0
        %596 = vmatprep.subr.mxu0 0.0
        %597 = vmatpush1.msra.mxu0 0.0
        %598 = vmatprep.subr.mxu0 0.0
        %599 = vmatpush1.msra.mxu0 0.0
        %600 = vmatprep.subr.mxu0 0.0
        %601 = vmatpush1.msra.mxu0 0.0
        %602 = vmatprep.subr.mxu0 0.0
        %603 = vmatpush1.msra.mxu0 0.0
        %604 = vmatprep.subr.mxu0 0.0
        %605 = vmatpush1.msra.mxu0 0.0
        %606 = vmatprep.subr.mxu0 0.0
        %607 = vmatpush1.msra.mxu0 0.0
        %608 = vmatprep.subr.mxu0 0.0
        %609 = vmatpush1.msra.mxu0 0.0
        %610 = vmatprep.subr.mxu0 0.0
        %611 = vmatpush1.msra.mxu0 0.0
        %612 = vmatprep.subr.mxu0 0.0
        %613 = vmatpush1.msra.mxu0 0.0
        %614 = vmatprep.mubr.f32.mxu0 0.0
        %615 = vmatmul.mubr.f32.gmra.mrb[0].mxu0 %v548
        %v616 = vpop.f32.mrb[0].mxu0
        %v617 = vadd.f32 %v544, %v616
        %v618 = vpop.f32.mrb[0].mxu0
        %619 = vdwg.mxu0
        %v620 = vld [vmem:[#allocation2] sm:$0xff]
        %v621 = vld [vmem:[#allocation2 + $0x8] sm:$0xff]
        %v622 = vld [vmem:[#allocation2 + $0x10] sm:$0xff]
        %v623 = vld [vmem:[#allocation2 + $0x18] sm:$0xff]
        %v625 = vsel %vm546, %v617, 0
        %627 = vmatprep.subr.mxu0 0.0
        %628 = vmatpush1.msra.mxu0 %v620
        %629 = vmatprep.subr.mxu0 0.0
        %630 = vmatpush1.msra.mxu0 %v621
        %631 = vmatprep.subr.mxu0 0.0
        %632 = vmatpush1.msra.mxu0 %v622
        %633 = vmatprep.subr.mxu0 0.0
        %634 = vmatpush1.msra.mxu0 %v623
        %635 = vmatprep.subr.mxu0 0.0
        %636 = vmatpush1.msra.mxu0 0.0
        %637 = vmatprep.subr.mxu0 0.0
        %638 = vmatpush1.msra.mxu0 0.0
        %639 = vmatprep.subr.mxu0 0.0
        %640 = vmatpush1.msra.mxu0 0.0
        %641 = vmatprep.subr.mxu0 0.0
        %642 = vmatpush1.msra.mxu0 0.0
        %643 = vmatprep.subr.mxu0 0.0
        %644 = vmatpush1.msra.mxu0 0.0
        %645 = vmatprep.subr.mxu0 0.0
        %646 = vmatpush1.msra.mxu0 0.0
        %647 = vmatprep.subr.mxu0 0.0
        %648 = vmatpush1.msra.mxu0 0.0
        %649 = vmatprep.subr.mxu0 0.0
        %650 = vmatpush1.msra.mxu0 0.0
        %651 = vmatprep.subr.mxu0 0.0
        %652 = vmatpush1.msra.mxu0 0.0
        %653 = vmatprep.subr.mxu0 0.0
        %654 = vmatpush1.msra.mxu0 0.0
        %655 = vmatprep.subr.mxu0 0.0
        %656 = vmatpush1.msra.mxu0 0.0
        %657 = vmatprep.subr.mxu0 0.0
        %658 = vmatpush1.msra.mxu0 0.0
        %659 = vmatprep.subr.mxu0 0.0
        %660 = vmatpush1.msra.mxu0 0.0
        %661 = vmatprep.subr.mxu0 0.0
        %662 = vmatpush1.msra.mxu0 0.0
        %663 = vmatprep.subr.mxu0 0.0
        %664 = vmatpush1.msra.mxu0 0.0
        %665 = vmatprep.subr.mxu0 0.0
        %666 = vmatpush1.msra.mxu0 0.0
        %667 = vmatprep.subr.mxu0 0.0
        %668 = vmatpush1.msra.mxu0 0.0
        %669 = vmatprep.subr.mxu0 0.0
        %670 = vmatpush1.msra.mxu0 0.0
        %671 = vmatprep.subr.mxu0 0.0
        %672 = vmatpush1.msra.mxu0 0.0
        %673 = vmatprep.subr.mxu0 0.0
        %674 = vmatpush1.msra.mxu0 0.0
        %675 = vmatprep.subr.mxu0 0.0
        %676 = vmatpush1.msra.mxu0 0.0
        %677 = vmatprep.subr.mxu0 0.0
        %678 = vmatpush1.msra.mxu0 0.0
        %679 = vmatprep.subr.mxu0 0.0
        %680 = vmatpush1.msra.mxu0 0.0
        %681 = vmatprep.subr.mxu0 0.0
        %682 = vmatpush1.msra.mxu0 0.0
        %683 = vmatprep.subr.mxu0 0.0
        %684 = vmatpush1.msra.mxu0 0.0
        %685 = vmatprep.subr.mxu0 0.0
        %686 = vmatpush1.msra.mxu0 0.0
        %687 = vmatprep.subr.mxu0 0.0
        %688 = vmatpush1.msra.mxu0 0.0
        %689 = vmatprep.subr.mxu0 0.0
        %690 = vmatpush1.msra.mxu0 0.0
        %691 = vmatprep.mubr.f32.mxu0 0.0
        %692 = vmatmul.mubr.f32.gmra.mrb[0].mxu0 %v625
        %v693 = vpop.f32.mrb[0].mxu0
        %v694 = vadd.f32 0.0, %v693
        %v695 = vpop.f32.mrb[0].mxu0
        %696 = vdwg.mxu0
        %vm697 = vcmask 64512
        %v698 = vsel %vm697, %v694, -inf
        %699 = vmax.xlane.f32.xlu0 %v698
        %v700 = vpop.xlane.xlu0 %699
        %v701 = vsub.f32 %v694, %v700
        %v702 = vmul.f32 %v701, 1.442695
        %v703 = vpow.pop %v702
        %v704 = vsel %vm697, %v703, 0.0
        %705 = vadd.xlane.f32.xlu0 %v704
        %v706 = vpop.xlane.xlu0 %705
        %v707 = vrcp.pop %v706
        %v708 = vmul.f32 %v706, %v707
        %v709 = vsub.f32 2.0, %v708
        %v710 = vmul.f32 %v707, %v709
        %v711 = vmul.f32 %v703, %v710
        %v712 = vld [vmem:[#allocation3] sm:$0xff]
        %v714 = vsel %vm697, %v711, 0
        %716 = vmatprep.subr.mxu0 0.0
        %717 = vmatpush1.msra.mxu0 %v712
        %718 = vmatprep.subr.mxu0 0.0
        %719 = vmatpush1.msra.mxu0 0.0
        %720 = vmatprep.subr.mxu0 0.0
        %721 = vmatpush1.msra.mxu0 0.0
        %722 = vmatprep.subr.mxu0 0.0
        %723 = vmatpush1.msra.mxu0 0.0
        %724 = vmatprep.subr.mxu0 0.0
        %725 = vmatpush1.msra.mxu0 0.0
        %726 = vmatprep.subr.mxu0 0.0
        %727 = vmatpush1.msra.mxu0 0.0
        %728 = vmatprep.subr.mxu0 0.0
        %729 = vmatpush1.msra.mxu0 0.0
        %730 = vmatprep.subr.mxu0 0.0
        %731 = vmatpush1.msra.mxu0 0.0
        %732 = vmatprep.subr.mxu0 0.0
        %733 = vmatpush1.msra.mxu0 0.0
        %734 = vmatprep.subr.mxu0 0.0
        %735 = vmatpush1.msra.mxu0 0.0
        %736 = vmatprep.subr.mxu0 0.0
        %737 = vmatpush1.msra.mxu0 0.0
        %738 = vmatprep.subr.mxu0 0.0
        %739 = vmatpush1.msra.mxu0 0.0
        %740 = vmatprep.subr.mxu0 0.0
        %741 = vmatpush1.msra.mxu0 0.0
        %742 = vmatprep.subr.mxu0 0.0
        %743 = vmatpush1.msra.mxu0 0.0
        %744 = vmatprep.subr.mxu0 0.0
        %745 = vmatpush1.msra.mxu0 0.0
        %746 = vmatprep.subr.mxu0 0.0
        %747 = vmatpush1.msra.mxu0 0.0
        %748 = vmatprep.subr.mxu0 0.0
        %749 = vmatpush1.msra.mxu0 0.0
        %750 = vmatprep.subr.mxu0 0.0
        %751 = vmatpush1.msra.mxu0 0.0
        %752 = vmatprep.subr.mxu0 0.0
        %753 = vmatpush1.msra.mxu0 0.0
        %754 = vmatprep.subr.mxu0 0.0
        %755 = vmatpush1.msra.mxu0 0.0
        %756 = vmatprep.subr.mxu0 0.0
        %757 = vmatpush1.msra.mxu0 0.0
        %758 = vmatprep.subr.mxu0 0.0
        %759 = vmatpush1.msra.mxu0 0.0
        %760 = vmatprep.subr.mxu0 0.0
        %761 = vmatpush1.msra.mxu0 0.0
        %762 = vmatprep.subr.mxu0 0.0
        %763 = vmatpush1.msra.mxu0 0.0
        %764 = vmatprep.subr.mxu0 0.0
        %765 = vmatpush1.msra.mxu0 0.0
        %766 = vmatprep.subr.mxu0 0.0
        %767 = vmatpush1.msra.mxu0 0.0
        %768 = vmatprep.subr.mxu0 0.0
        %769 = vmatpush1.msra.mxu0 0.0
        %770 = vmatprep.subr.mxu0 0.0
        %771 = vmatpush1.msra.mxu0 0.0
        %772 = vmatprep.subr.mxu0 0.0
        %773 = vmatpush1.msra.mxu0 0.0
        %774 = vmatprep.subr.mxu0 0.0
        %775 = vmatpush1.msra.mxu0 0.0
        %776 = vmatprep.subr.mxu0 0.0
        %777 = vmatpush1.msra.mxu0 0.0
        %778 = vmatprep.subr.mxu0 0.0
        %779 = vmatpush1.msra.mxu0 0.0
        %780 = vmatprep.mubr.f32.mxu0 0.0
        %781 = vmatmul.mubr.f32.gmra.mrb[0].mxu0 %v714
        %v782 = vpop.f32.mrb[0].mxu0
        %v783 = vadd.f32 0.0, %v782
        %v784 = vpop.f32.mrb[0].mxu0
        %785 = vdwg.mxu0
        %786 = vst.msk [vmem:[%s313] sm:$0xff] %vm546, %v783
        %787 = vst.msk [vmem:[%s320] sm:$0xff] %vm697, %v711
        %s788 = sand.u32 %s147, 1
        %s789 = scalar_lea.sflag [#allocation6], %s788
        %s790 = sand.u32 %s147, 1
        %s791 = smul.addr %s790, 8
        %s792 = scalar_lea.vmem [#allocation10], %s791
        %s793 = sand.u32 %s175, 1
        %s794 = scalar_lea.sflag [#allocation12], %s793
        %s795 = sand.u32 %s175, 1
        %s796 = smul.addr %s795, 8
        %s797 = scalar_lea.vmem [#allocation11], %s796
        // Predicated region
        $region53: #{tpu_custom_call.1} parent=35 // pred_check
          %p798 = pneg %p157
        $region54: #{tpu_custom_call.1} parent=35 // pred_check_branch
          %800 = sbr.rel (%p798) target = $region56
        $region55: #{tpu_custom_call.1} parent=35 // pred_region
          %s802 = ssub.s32 128, 128
          %803 = vsyncadd %s789, %s802
          %s804 = sadd.s32 %s34, %s33
          %s805 = smul.addr %s804, 128
          %s806 = scalar_lea.hbm %s4, %s805
          %s808 = sshll.u32 %s792, 4
          %s809 = int_to_ptr.vmem [resolvable:$true] %s808
          %811 = dma.vmem_to_hbm [thread:$0]  %s809, 128, %s806, %s789
        $region56: #{tpu_custom_call.1} parent=35 // pred_fallthru
          _
        // Predicated region
        $region57: #{tpu_custom_call.1} parent=35 // pred_check
          %p812 = pneg %p185
        $region58: #{tpu_custom_call.1} parent=35 // pred_check_branch
          %814 = sbr.rel (%p812) target = $region60
        $region59: #{tpu_custom_call.1} parent=35 // pred_region
          %s816 = ssub.s32 128, 128
          %817 = vsyncadd %s794, %s816
          %s818 = sadd.s32 %s34, %s33
          %s819 = smul.addr %s818, 128
          %s820 = scalar_lea.hbm %s5, %s819
          %s822 = sshll.u32 %s797, 4
          %s823 = int_to_ptr.vmem [resolvable:$true] %s822
          %825 = dma.vmem_to_hbm [thread:$0]  %s823, 128, %s820, %s794
        $region60: #{tpu_custom_call.1} parent=35 // pred_fallthru
          _
      $region36: #{tpu_custom_call.1} parent=5 // pred_fallthru
        _
      %p826 = scmp.le.s32.totalorder 2, %s24
      // Predicated region
      $region61: #{tpu_custom_call.1} parent=5 // pred_check
        %p827 = pneg %p826
      $region62: #{tpu_custom_call.1} parent=5 // pred_check_branch
        %829 = sbr.rel (%p827) target = $region64
      $region63: #{tpu_custom_call.1} parent=5 // pred_region
        %s830 = ssub.s32 %s24, 2
        // Predicated region
        $region65: #{tpu_custom_call.1} parent=63 // pred_check
          %p831 = pneg %p163
        $region66: #{tpu_custom_call.1} parent=63 // pred_check_branch
          %833 = sbr.rel (%p831) target = $region68
        $region67: #{tpu_custom_call.1} parent=63 // pred_region
          %s834 = sand.u32 %s148, 1
          %s835 = scalar_lea.sflag [#allocation6], %s834
          %s836 = sand.u32 %s148, 1
          %s837 = smul.addr %s836, 8
          %s838 = scalar_lea.vmem [#allocation10], %s837
          %839 = dma.done %s835, 128
        $region68: #{tpu_custom_call.1} parent=63 // pred_fallthru
          _
        // Predicated region
        $region69: #{tpu_custom_call.1} parent=63 // pred_check
          %p840 = pneg %p191
        $region70: #{tpu_custom_call.1} parent=63 // pred_check_branch
          %842 = sbr.rel (%p840) target = $region72
        $region71: #{tpu_custom_call.1} parent=63 // pred_region
          %s843 = sand.u32 %s176, 1
          %s844 = scalar_lea.sflag [#allocation12], %s843
          %s845 = sand.u32 %s176, 1
          %s846 = smul.addr %s845, 8
          %s847 = scalar_lea.vmem [#allocation11], %s846
          %848 = dma.done %s844, 128
        $region72: #{tpu_custom_call.1} parent=63 // pred_fallthru
          _
      $region64: #{tpu_custom_call.1} parent=5 // pred_fallthru
        _
    $region6: #{tpu_custom_call.1} parent=1 // loop_footer
      %s28 = sadd.s32 1, %s24
    $region7: #{tpu_custom_call.1} parent=1 // loop_footer_branch
      %23 = sbr.rel target = $region3
    $region8: #{tpu_custom_call.1} parent=1 // loop_exit
      _
    %849 = vsyncpa [#allocation5], 1
    %s850 = scalar_lea.sflag [#allocation5], 1
    %851 = vsyncpa %s850, 1
    %852 = vsyncpa [#allocation8], 1
    %s853 = scalar_lea.sflag [#allocation8], 1
    %854 = vsyncpa %s853, 1
    %855 = vsyncpa [#allocation6], 1
    %s856 = scalar_lea.sflag [#allocation6], 1
    %857 = vsyncpa %s856, 1
    %858 = vsyncpa [#allocation12], 1
    %s859 = scalar_lea.sflag [#allocation12], 1
    %860 = vsyncpa %s859, 1

</llo_original>
